<compile_context>
chip_gen: v5e
topology: v5e:2x2
jax: 0.10.0
libtpu: 0.0.40
codegen_flags: <defaults>
</compile_context>

<pallas_src>
import jax
import jax.numpy as jnp
from jax.experimental import pallas as pl
from jax.experimental.pallas import tpu as pltpu


_MIN_SPLIT_BYTES = 2 * 1024 * 1024   # arrays above this get >= 2 grid steps (v7x dual-TC)
_VMEM_LIMIT_BYTES = 32 * 1024 * 1024  # 2x headroom over 16 MiB footprint; safe on v5e/v6e/v7x


def _sc_mixed_kernel(scale_ref, x_ref, o_ref):
    # scale_ref: SMEM (1,) f32 pre-folded mixture scale (w_none*0 + w_skip).
    # x_ref / o_ref: identical lane-dense VMEM tiles.
    o_ref[...] = (scale_ref[0] * x_ref[...]).astype(o_ref.dtype)


def _round8_down(n):
    return (n // 8) * 8


def _pick_block_rows(rows, lane, itemsize, tile_bytes, array_bytes):
    """Rows per block: multiple of 8 (or full `rows`), ~tile_bytes, prefers even divisors."""
    row_bytes = lane * itemsize
    target = max(8, _round8_down(tile_bytes // row_bytes))
    # v7x has 2 TensorCores: HBM-bound work big enough to matter gets >= 2 grid steps.
    if array_bytes > _MIN_SPLIT_BYTES and rows >= 16:
        target = min(target, max(8, _round8_down(rows // 2)))
    if rows <= target:
        return rows                       # one full block (block dims == array dims)
    cand, floor = target, max(8, target // 2)
    while cand >= floor:                  # prefer an even divisor -> no masked trailing tile
        if rows % cand == 0:
            return cand
        cand -= 8
    return target                         # ragged trailing block; Pallas masks it


def _run(scale, x2d, block_rows, donate):
    rows, lane = x2d.shape
    itemsize = x2d.dtype.itemsize
    total = rows * lane
    return pl.pallas_call(
        _sc_mixed_kernel,
        out_shape=jax.ShapeDtypeStruct((rows, lane), x2d.dtype),
        grid=(pl.cdiv(rows, block_rows),),
        in_specs=[
            pl.BlockSpec(memory_space=pltpu.SMEM),                 # scale (1,)
            pl.BlockSpec((block_rows, lane), lambda i: (i, 0)),    # x tile
        ],
        out_specs=pl.BlockSpec((block_rows, lane), lambda i: (i, 0)),
        compiler_params=pltpu.CompilerParams(
            dimension_semantics=("parallel",),
            vmem_limit_bytes=_VMEM_LIMIT_BYTES,
        ),
        cost_estimate=pl.CostEstimate(
            flops=total, transcendentals=0, bytes_accessed=2 * total * itemsize
        ),
        input_output_aliases=({1: 0} if donate else {}),
    )(scale, x2d)


def sc_mixed_op(x, weights, *, tile_bytes=4 * 1024 * 1024, donate=False):
    """ScMixedOp forward.  x: activations (e.g. NCHW), weights: (2,) over ['none', 'skip'].

    out = weights[0] * (0 * x) + weights[1] * x
    Set donate=True when the caller can donate x (halves HBM footprint of the call).
    """
    orig_shape = x.shape
    total = x.size
    itemsize = x.dtype.itemsize
    array_bytes = total * itemsize

    w32 = weights.astype(jnp.float32)
    # 'none' contributes w[0]*0, 'skip' contributes w[1]; folded once in scalar math.
    scale = (w32[0] * 0.0 + w32[1]).reshape(1)

    # Pick a lane-dense 2-D layout (no padding / extra HBM round-trips).
    lane = next((c for c in (4096, 2048, 1024, 512, 256, 128) if total % c == 0), None)
    if lane is not None:
        rows = total // lane
    elif x.ndim >= 3:
        # Odd totals (ragged H/W): last block dim = full H*W keeps stores as
        # lane-dense as the shape allows; leading dim tiles in multiples of 8.
        lane = orig_shape[-2] * orig_shape[-1]
        rows = total // lane
        # TODO(synk): for such ragged shapes a plain XLA scalar-mul (fused into
        # neighbouring ops) is usually preferable to any custom kernel.
    else:
        lane, rows = total, 1  # tiny / 1-D odd case: single full block

    x2d = x.reshape(rows, lane)
    block_rows = _pick_block_rows(rows, lane, itemsize, tile_bytes, array_bytes)
    out2d = _run(scale, x2d, block_rows, donate)
    return out2d.reshape(orig_shape)


if __name__ == "__main__":
    key = jax.random.PRNGKey(0)
    kx, kw = jax.random.split(key)

    # Primary test: NCHW activations, total divisible by 128 -> flat lane-dense path.
    x = jax.random.normal(kx, (2, 4, 16, 16), dtype=jnp.float32)
    # Architecture weights over ['none', 'skip'] (softmax of 2 logits).
    weights = jax.nn.softmax(jax.random.normal(kw, (2,), dtype=jnp.float32))

    out = jax.block_until_ready(sc_mixed_op(x, weights))
    ref = weights[0] * (0.0 * x) + weights[1] * x
    assert out.shape == x.shape
    assert jnp.allclose(out, ref, atol=1e-6, rtol=1e-6), "mismatch vs reference"

    # Secondary test: total not divisible by 128 -> (B*C, H*W) lane-dense fallback.
    x_odd = jax.random.normal(kx, (1, 3, 5, 7), dtype=jnp.float32)
    out_odd = jax.block_until_ready(sc_mixed_op(x_odd, weights))
    ref_odd = weights[0] * (0.0 * x_odd) + weights[1] * x_odd
    assert out_odd.shape == x_odd.shape
    assert jnp.allclose(out_odd, ref_odd, atol=1e-6, rtol=1e-6), "mismatch (odd shape)"

    print("KERNEL_OK")
</pallas_src>

<mosaic_0001>
module attributes {stable_mosaic.version = 11 : i64} {
  func.func @_sc_mixed_kernel(%arg0: i32, %arg1: memref<1xf32, #tpu.memory_space<smem>>, %arg2: memref<1x2048xf32, #tpu.memory_space<vmem>>, %arg3: memref<1x2048xf32, #tpu.memory_space<vmem>>) attributes {dimension_semantics = [#tpu.dimension_semantics<parallel>], iteration_bounds = array<i64: 1>, scalar_prefetch = 0 : i64, scratch_operands = 0 : i64, tpu.core_type = #tpu.core_type<tc>, window_params = [{transform_indices = @transform_0, window_bounds = array<i64: 1>}, {transform_indices = @transform_1, window_bounds = array<i64: 1, 2048>}, {transform_indices = @transform_2, window_bounds = array<i64: 1, 2048>}]} {
    %c0 = arith.constant 0 : index
    %0 = memref.load %arg1[%c0] : memref<1xf32, #tpu.memory_space<smem>>
    %c0_0 = arith.constant 0 : index
    %c0_1 = arith.constant 0 : index
    %1 = vector.load %arg2[%c0_0, %c0_1] : memref<1x2048xf32, #tpu.memory_space<vmem>>, vector<1x2048xf32>
    %2 = vector.broadcast %0 : f32 to vector<1x2048xf32>
    %3 = arith.mulf %2, %1 : vector<1x2048xf32>
    %c0_2 = arith.constant 0 : index
    %c0_3 = arith.constant 0 : index
    %4 = vector.load %arg3[%c0_2, %c0_3] : memref<1x2048xf32, #tpu.memory_space<vmem>>, vector<1x2048xf32>
    tpu.vector_store %arg3[%c0_2, %c0_3], %3 {strides = array<i32>} : memref<1x2048xf32, #tpu.memory_space<vmem>>, vector<1x2048xf32>,
    return
  }
  func.func @transform_0(%arg0: i32) -> i32 {
    %c0_i32 = arith.constant 0 : i32
    %c0_i32_0 = arith.constant 0 : i32
    return %c0_i32 : i32
  }
  func.func @transform_1(%arg0: i32) -> (i32, i32) {
    %c0_i32 = arith.constant 0 : i32
    %c0_i32_0 = arith.constant 0 : i32
    return %arg0, %c0_i32 : i32, i32
  }
  func.func @transform_2(%arg0: i32) -> (i32, i32) {
    %c0_i32 = arith.constant 0 : i32
    %c0_i32_0 = arith.constant 0 : i32
    return %arg0, %c0_i32 : i32, i32
  }
}

</mosaic_0001>

<llo_original>
// kernel: tpu_custom_call.1
$region0: #{tpu_custom_call.1}
  #allocation0 [shape = 'u32[]', space=smem, size = 0x4, offset = 0x4, fixed_abs, tag = 'smem constant byte address 0x4 - core index']
  #allocation1 [shape = 'u32[72,128]{1,0:T(1,128)}', space=vmem, size = 0x9000, scoped, tag = 'internal scratch']
  #allocation2 [shape = 'f32[1]{0:T(128)S(6)}', space=smem, size = 0x200, scoped, tag = 'scoped memory for tpu_custom_call.1']
  %s0 = inlined_call_operand.<no memory space> [shape: f32[1], index: 0, kind: input, shape index: {}]
  %s1 = inlined_call_operand.hbm [shape: f32[1,2048], index: 1, kind: input, shape index: {}]
  %s2 = inlined_call_operand.hbm [shape: f32[1,2048], index: 2, kind: output, shape index: {}]
  %s3 = sld [smem:[#allocation0]]
  $region22: #{tpu_custom_call.1} parent=0
    _
  %s5 = ssub.s32 1, %s3
  %s6 = scalar_select 0, %s5, %s3
  %7 = sst [smem:[#allocation2]] %s0
  $region1: #{tpu_custom_call.1} parent=0
    #allocation3 [shape = 'u8[8192]{0}', space=vmem, size = 0x2000, scoped, tag = 'input window, operand 1, single buffered']
    #allocation4 [shape = 's32[1]{0}', space=sflag, size = 0x4, scoped, tag = 'scoped memory for tpu_custom_call.1']
    #allocation5 [shape = 's32[1]{0}', space=sflag, size = 0x4, scoped, tag = 'scoped memory for tpu_custom_call.1']
    #allocation6 [shape = 'u8[8192]{0}', space=vmem, size = 0x2000, scoped, tag = 'output window, operand 0, single buffered']
    %8 = vsyncpa [#allocation4], 0
    %9 = vsyncpa [#allocation5], 0
    // Predicated region
    $region2: #{tpu_custom_call.1} parent=1 // pred_check
      _
    $region3: #{tpu_custom_call.1} parent=1 // pred_check_branch
      %11 = sbr.rel (0) target = $region5
    $region4: #{tpu_custom_call.1} parent=1 // pred_region
      _
    $region5: #{tpu_custom_call.1} parent=1 // pred_fallthru
      _
    // Predicated region
    $region6: #{tpu_custom_call.1} parent=1 // pred_check
      _
    $region7: #{tpu_custom_call.1} parent=1 // pred_check_branch
      %13 = sbr.rel (0) target = $region9
    $region8: #{tpu_custom_call.1} parent=1 // pred_region
      %15 = vsyncadd [#allocation4], 0
      %s17 = sshll.u32 %s1, 4
      %s18 = int_to_ptr.hbm [resolvable:$true] %s17
      %s19 = sshll.u32 [#allocation3], 4
      %s20 = int_to_ptr.vmem [resolvable:$true] %s19
      %22 = dma.hbm_to_vmem [thread:$0]  %s18, 256, %s20, [#allocation4]
    $region9: #{tpu_custom_call.1} parent=1 // pred_fallthru
      _
    // Predicated region
    $region10: #{tpu_custom_call.1} parent=1 // pred_check
      _
    $region11: #{tpu_custom_call.1} parent=1 // pred_check_branch
      %24 = sbr.rel (0) target = $region13
    $region12: #{tpu_custom_call.1} parent=1 // pred_region
      %26 = dma.done [#allocation4], 256
    $region13: #{tpu_custom_call.1} parent=1 // pred_fallthru
      _
    %s27 = sld [smem:[#allocation2]]
    %v28 = vld [vmem:[#allocation3] sm:$0xff]
    %v29 = vld [vmem:[#allocation3 + $0x8] sm:$0xff]
    %v30 = vstv %s27
    %v31 = vmul.f32 %v30, %v28
    %v32 = vmul.f32 %v30, %v29
    %33 = vst [vmem:[#allocation6] sm:$0xff] %v31
    %34 = vst [vmem:[#allocation6 + $0x8] sm:$0xff] %v32
    // Predicated region
    $region14: #{tpu_custom_call.1} parent=1 // pred_check
      _
    $region15: #{tpu_custom_call.1} parent=1 // pred_check_branch
      %36 = sbr.rel (0) target = $region17
    $region16: #{tpu_custom_call.1} parent=1 // pred_region
      %38 = vsyncadd [#allocation5], 0
      %s40 = sshll.u32 [#allocation6], 4
      %s41 = int_to_ptr.vmem [resolvable:$true] %s40
      %s42 = sshll.u32 %s2, 4
      %s43 = int_to_ptr.hbm [resolvable:$true] %s42
      %45 = dma.vmem_to_hbm [thread:$0]  %s41, 256, %s43, [#allocation5]
    $region17: #{tpu_custom_call.1} parent=1 // pred_fallthru
      _
    // Predicated region
    $region18: #{tpu_custom_call.1} parent=1 // pred_check
      _
    $region19: #{tpu_custom_call.1} parent=1 // pred_check_branch
      %47 = sbr.rel (0) target = $region21
    $region20: #{tpu_custom_call.1} parent=1 // pred_region
      %49 = dma.done [#allocation5], 256
    $region21: #{tpu_custom_call.1} parent=1 // pred_fallthru
      _
    %50 = vsyncpa [#allocation4], 1
    %51 = vsyncpa [#allocation5], 1

</llo_original>
